<compile_context>
chip_gen: v5e
topology: v5e:2x2
jax: 0.10.0
libtpu: 0.0.40
codegen_flags: <defaults>
</compile_context>

<pallas_src>
import functools

import jax
import jax.numpy as jnp
from jax.experimental import pallas as pl
from jax.experimental.pallas import tpu as pltpu


def _round_up(x, m):
    return (x + m - 1) // m * m


def critic_kernel(obs_ref, act_ref, w1o_ref, w1a_ref, b1_ref, w2_ref, b2_ref,
                  w3_ref, b3_ref, o_ref, *, ensemble_size, hidden_dim, fuse_l2):
    """One batch tile, all ensemble members (ensemble fused along lanes).

    obs_ref : (Bblk, obs_dim) bf16   w2_ref : (E*H, E*H) bf16 block-diag | (E, H, H) bf16
    act_ref : (Bblk, act_dim) bf16   b2_ref : (1, E*H)  f32              | (E, 1, H) f32
    w1o_ref : (obs_dim, E*H)  bf16   w3_ref : (E, 1, H) f32
    w1a_ref : (act_dim, E*H)  bf16   b3_ref : (E,)      f32  SMEM
    b1_ref  : (1, E*H)        f32    o_ref  : (E, Bblk) f32
    """
    E, H = ensemble_size, hidden_dim
    obs = obs_ref[...]
    act = act_ref[...]

    # ---- Layer 1: ONE fused matmul pair for all E members (concat fused). ----
    h = (jnp.dot(obs, w1o_ref[...], preferred_element_type=jnp.float32)
         + jnp.dot(act, w1a_ref[...], preferred_element_type=jnp.float32)
         + b1_ref[...])                                    # (Bblk, E*H) f32
    h = jnp.maximum(h, 0.0)

    if fuse_l2:
        # ---- Layer 2: single block-diagonal matmul across the ensemble. ----
        h = (jnp.dot(h.astype(w2_ref.dtype), w2_ref[...],
                     preferred_element_type=jnp.float32) + b2_ref[...])
        h = jnp.maximum(h, 0.0)                            # (Bblk, E*H) f32
        for e in range(E):                                 # statically unrolled
            he = h[:, e * H:(e + 1) * H]                   # (Bblk, H)
            # Layer 3: M=1 MXU dot -> lane-dense (1, Bblk) row, stored directly.
            row = jax.lax.dot_general(
                w3_ref[e], he, dimension_numbers=(((1,), (1,)), ((), ())),
                preferred_element_type=jnp.float32) + b3_ref[e]
            o_ref[pl.ds(e, 1), :] = row.astype(o_ref.dtype)
    else:
        for e in range(E):                                 # statically unrolled
            he = h[:, e * H:(e + 1) * H]                   # (Bblk, H) f32
            he = (jnp.dot(he.astype(w2_ref.dtype), w2_ref[e],
                          preferred_element_type=jnp.float32) + b2_ref[e])
            he = jnp.maximum(he, 0.0)
            row = jax.lax.dot_general(
                w3_ref[e], he, dimension_numbers=(((1,), (1,)), ((), ())),
                preferred_element_type=jnp.float32) + b3_ref[e]
            o_ref[pl.ds(e, 1), :] = row.astype(o_ref.dtype)


def continuous_mlp_critic(obs, action, params, *, max_block_b=512):
    """obs: (B, obs_dim), action: (B, act_dim) -> q: (E, B)."""
    w1, b1, w2, b2, w3, b3 = params
    E, D, H = w1.shape
    B, obs_dim = obs.shape
    act_dim = action.shape[-1]
    assert D == obs_dim + act_dim

    compute_dtype = jnp.bfloat16  # MXU-native on v5e/v6e/v7x; f32 accumulation.
    obs_c = obs.astype(compute_dtype)
    act_c = action.astype(compute_dtype)

    # ---- Weight prep (once, wrapper-side). ----
    # Concat fused: x @ W1 == obs @ W1[:obs_dim] + act @ W1[obs_dim:].
    # Ensemble fused: (E, d, H) -> (d, E*H) so layer 1 is a single matmul pair.
    w1_obs = jnp.transpose(w1[:, :obs_dim, :], (1, 0, 2)).reshape(obs_dim, E * H)
    w1_act = jnp.transpose(w1[:, obs_dim:, :], (1, 0, 2)).reshape(act_dim, E * H)
    w1_obs = w1_obs.astype(compute_dtype)
    w1_act = w1_act.astype(compute_dtype)
    b1_f = jnp.transpose(b1, (1, 0, 2)).reshape(1, E * H).astype(jnp.float32)

    # Layer 2: block-diagonal ensemble fusion when the fused width fits the MXU.
    fuse_l2 = (E * H) <= 256
    if fuse_l2:
        w2_bd = jnp.zeros((E * H, E * H), dtype=w2.dtype)
        for e in range(E):
            w2_bd = w2_bd.at[e * H:(e + 1) * H, e * H:(e + 1) * H].set(w2[e])
        w2_in = w2_bd.astype(compute_dtype)                           # (E*H, E*H)
        b2_in = jnp.transpose(b2, (1, 0, 2)).reshape(1, E * H).astype(jnp.float32)
        w2_spec = pl.BlockSpec((E * H, E * H), lambda i: (0, 0))
        b2_spec = pl.BlockSpec((1, E * H), lambda i: (0, 0))
    else:
        w2_in = w2.astype(compute_dtype)                               # (E, H, H)
        b2_in = b2.astype(jnp.float32)                                 # (E, 1, H)
        w2_spec = pl.BlockSpec((E, H, H), lambda i: (0, 0, 0))
        b2_spec = pl.BlockSpec((E, 1, H), lambda i: (0, 0, 0))

    w3_row = jnp.transpose(w3, (0, 2, 1)).astype(jnp.float32)          # (E, 1, H)
    b3_vec = jnp.reshape(b3, (E,)).astype(jnp.float32)                 # (E,) SMEM

    # ---- Batch tiling: cdiv + zero padding (no ragged whole-batch fallback). --
    if B <= max_block_b:
        block_b = _round_up(B, 8)
    else:
        block_b = max_block_b  # multiple of 128 -> lane-dense output blocks
    b_pad = _round_up(B, block_b)
    if b_pad != B:
        obs_c = jnp.pad(obs_c, ((0, b_pad - B), (0, 0)))
        act_c = jnp.pad(act_c, ((0, b_pad - B), (0, 0)))
    grid = (b_pad // block_b,)

    # ---- Explicit VMEM budget (weights are grid-invariant/resident). ----
    def _nbytes(a):
        return int(a.size) * a.dtype.itemsize
    weight_bytes = sum(_nbytes(t) for t in
                       (w1_obs, w1_act, b1_f, w2_in, b2_in, w3_row))
    act_bytes = block_b * (obs_dim + act_dim) * obs_c.dtype.itemsize
    out_bytes = E * block_b * 4
    scratch_bytes = 2 * block_b * E * H * 4          # fused hidden slabs (f32)
    vmem_needed = 2 * weight_bytes + 4 * (act_bytes + out_bytes) + scratch_bytes
    vmem_limit = int(min(max(vmem_needed + (8 << 20), 32 << 20), 100 << 20))

    flops = 2 * B * E * (D * H + H * H + H)
    bytes_accessed = int(weight_bytes
                         + _nbytes(obs_c) + _nbytes(act_c)
                         + E * b_pad * 4)

    kernel = functools.partial(critic_kernel, ensemble_size=E, hidden_dim=H,
                               fuse_l2=fuse_l2)

    out = pl.pallas_call(
        kernel,
        out_shape=jax.ShapeDtypeStruct((E, b_pad), jnp.float32),
        grid=grid,
        in_specs=[
            pl.BlockSpec((block_b, obs_dim), lambda i: (i, 0)),   # obs tile
            pl.BlockSpec((block_b, act_dim), lambda i: (i, 0)),   # action tile
            pl.BlockSpec((obs_dim, E * H), lambda i: (0, 0)),     # W1_obs fused
            pl.BlockSpec((act_dim, E * H), lambda i: (0, 0)),     # W1_act fused
            pl.BlockSpec((1, E * H), lambda i: (0, 0)),           # b1 fused
            w2_spec,                                              # W2
            b2_spec,                                              # b2
            pl.BlockSpec((E, 1, H), lambda i: (0, 0, 0)),         # W3 (row form)
            pl.BlockSpec(memory_space=pltpu.MemorySpace.SMEM),    # b3 scalars
        ],
        out_specs=pl.BlockSpec((E, block_b), lambda i: (0, i)),
        compiler_params=pltpu.CompilerParams(
            dimension_semantics=("parallel",),
            vmem_limit_bytes=vmem_limit),
        cost_estimate=pl.CostEstimate(
            flops=flops, transcendentals=0, bytes_accessed=bytes_accessed),
    )(obs_c, act_c, w1_obs, w1_act, b1_f, w2_in, b2_in, w3_row, b3_vec)

    # (E, b_pad) -> (E, B): drop the zero-padded batch rows.
    return out[:, :B]


def init_params(key, input_dim, hidden_dim, ensemble_size):
    """Deterministic synthetic init (LinearEnsemble weight/bias shapes)."""
    ks = jax.random.split(key, 6)
    s1 = 1.0 / jnp.sqrt(input_dim)
    s2 = 1.0 / jnp.sqrt(hidden_dim)
    w1 = jax.random.normal(ks[0], (ensemble_size, input_dim, hidden_dim), jnp.float32) * s1
    b1 = jax.random.normal(ks[1], (ensemble_size, 1, hidden_dim), jnp.float32) * 0.01
    w2 = jax.random.normal(ks[2], (ensemble_size, hidden_dim, hidden_dim), jnp.float32) * s2
    b2 = jax.random.normal(ks[3], (ensemble_size, 1, hidden_dim), jnp.float32) * 0.01
    w3 = jax.random.normal(ks[4], (ensemble_size, hidden_dim, 1), jnp.float32) * s2
    b3 = jax.random.normal(ks[5], (ensemble_size, 1, 1), jnp.float32) * 0.01
    return (w1, b1, w2, b2, w3, b3)


def reference_forward(obs, action, params, compute_dtype=jnp.bfloat16):
    """Pure-JAX reference matching EnsembleMLP/LinearEnsemble semantics, using
    the same bf16-matmul / f32-accumulate recipe as the kernel."""
    w1, b1, w2, b2, w3, b3 = params
    E = w1.shape[0]
    x = jnp.concatenate([obs, action], axis=-1).astype(compute_dtype)
    xE = jnp.broadcast_to(x[None], (E,) + x.shape)                     # (E, B, D)
    h = jnp.einsum("ebd,edh->ebh", xE, w1.astype(compute_dtype),
                   preferred_element_type=jnp.float32) + b1
    h = jax.nn.relu(h)
    h = jnp.einsum("ebd,edh->ebh", h.astype(compute_dtype), w2.astype(compute_dtype),
                   preferred_element_type=jnp.float32) + b2
    h = jax.nn.relu(h)
    q = jnp.einsum("ebh,ehk->ebk", h, w3.astype(jnp.float32),
                   preferred_element_type=jnp.float32) + b3            # (E, B, 1)
    return q[..., 0]                                                   # (E, B)


if __name__ == "__main__":
    key = jax.random.PRNGKey(0)
    k_obs, k_act, k_par = jax.random.split(key, 3)

    B, OBS_DIM, ACT_DIM, HIDDEN, ENSEMBLE = 8, 11, 5, 32, 2
    obs = jax.random.normal(k_obs, (B, OBS_DIM), jnp.float32)
    action = jax.random.normal(k_act, (B, ACT_DIM), jnp.float32)
    params = init_params(k_par, OBS_DIM + ACT_DIM, HIDDEN, ENSEMBLE)

    q = continuous_mlp_critic(obs, action, params)
    q = jax.block_until_ready(q)

    q_ref = reference_forward(obs, action, params)
    assert q.shape == (ENSEMBLE, B), q.shape
    err = float(jnp.max(jnp.abs(q - q_ref)))
    assert jnp.allclose(q, q_ref, atol=5e-3, rtol=5e-3), f"mismatch vs reference (max abs err {err})"

    print("KERNEL_OK")
</pallas_src>

<mosaic_0001>
module attributes {stable_mosaic.version = 11 : i64} {
  func.func @critic_kernel(%arg0: i32, %arg1: memref<8x11xbf16, #tpu.memory_space<vmem>>, %arg2: memref<8x5xbf16, #tpu.memory_space<vmem>>, %arg3: memref<11x64xbf16, #tpu.memory_space<vmem>>, %arg4: memref<5x64xbf16, #tpu.memory_space<vmem>>, %arg5: memref<1x64xf32, #tpu.memory_space<vmem>>, %arg6: memref<64x64xbf16, #tpu.memory_space<vmem>>, %arg7: memref<1x64xf32, #tpu.memory_space<vmem>>, %arg8: memref<2x1x32xf32, #tpu.memory_space<vmem>>, %arg9: memref<2xf32, #tpu.memory_space<smem>>, %arg10: memref<2x8xf32, #tpu.memory_space<vmem>>) attributes {dimension_semantics = [#tpu.dimension_semantics<parallel>], iteration_bounds = array<i64: 1>, scalar_prefetch = 0 : i64, scratch_operands = 0 : i64, tpu.core_type = #tpu.core_type<tc>, window_params = [{transform_indices = @transform_0, window_bounds = array<i64: 8, 11>}, {transform_indices = @transform_1, window_bounds = array<i64: 8, 5>}, {pipeline_mode = #tpu.pipeline_mode<synchronous>, transform_indices = @transform_2, window_bounds = array<i64: 11, 64>}, {pipeline_mode = #tpu.pipeline_mode<synchronous>, transform_indices = @transform_3, window_bounds = array<i64: 5, 64>}, {pipeline_mode = #tpu.pipeline_mode<synchronous>, transform_indices = @transform_4, window_bounds = array<i64: 1, 64>}, {pipeline_mode = #tpu.pipeline_mode<synchronous>, transform_indices = @transform_5, window_bounds = array<i64: 64, 64>}, {pipeline_mode = #tpu.pipeline_mode<synchronous>, transform_indices = @transform_6, window_bounds = array<i64: 1, 64>}, {pipeline_mode = #tpu.pipeline_mode<synchronous>, transform_indices = @transform_7, window_bounds = array<i64: 2, 1, 32>}, {transform_indices = @transform_8, window_bounds = array<i64: 2>}, {transform_indices = @transform_9, window_bounds = array<i64: 2, 8>}]} {
    %c0 = arith.constant 0 : index
    %c0_0 = arith.constant 0 : index
    %0 = vector.load %arg1[%c0, %c0_0] : memref<8x11xbf16, #tpu.memory_space<vmem>>, vector<8x11xbf16>
    %c0_1 = arith.constant 0 : index
    %c0_2 = arith.constant 0 : index
    %1 = vector.load %arg2[%c0_1, %c0_2] : memref<8x5xbf16, #tpu.memory_space<vmem>>, vector<8x5xbf16>
    %c0_3 = arith.constant 0 : index
    %c0_4 = arith.constant 0 : index
    %2 = vector.load %arg3[%c0_3, %c0_4] : memref<11x64xbf16, #tpu.memory_space<vmem>>, vector<11x64xbf16>
    %cst = arith.constant dense<0.000000e+00> : vector<8x64xf32>
    %3 = tpu.matmul %0, %2, %cst {dimension_numbers = #tpu.dot_dimension_numbers<[1], [0], [0], [1], [0, 0, 1, 1], [], []>} : vector<8x11xbf16>, vector<11x64xbf16>, vector<8x64xf32> -> vector<8x64xf32>
    %c0_5 = arith.constant 0 : index
    %c0_6 = arith.constant 0 : index
    %4 = vector.load %arg4[%c0_5, %c0_6] : memref<5x64xbf16, #tpu.memory_space<vmem>>, vector<5x64xbf16>
    %cst_7 = arith.constant dense<0.000000e+00> : vector<8x64xf32>
    %5 = tpu.matmul %1, %4, %cst_7 {dimension_numbers = #tpu.dot_dimension_numbers<[1], [0], [0], [1], [0, 0, 1, 1], [], []>} : vector<8x5xbf16>, vector<5x64xbf16>, vector<8x64xf32> -> vector<8x64xf32>
    %6 = arith.addf %3, %5 : vector<8x64xf32>
    %c0_8 = arith.constant 0 : index
    %c0_9 = arith.constant 0 : index
    %7 = vector.load %arg5[%c0_8, %c0_9] : memref<1x64xf32, #tpu.memory_space<vmem>>, vector<1x64xf32>
    %8 = vector.broadcast %7 : vector<1x64xf32> to vector<8x64xf32>
    %9 = arith.addf %6, %8 : vector<8x64xf32>
    %cst_10 = arith.constant 0.000000e+00 : f32
    %10 = vector.broadcast %cst_10 : f32 to vector<8x64xf32>
    %11 = arith.maximumf %9, %10 : vector<8x64xf32>
    %12 = arith.truncf %11 : vector<8x64xf32> to vector<8x64xbf16>
    %c0_11 = arith.constant 0 : index
    %c0_12 = arith.constant 0 : index
    %13 = vector.load %arg6[%c0_11, %c0_12] : memref<64x64xbf16, #tpu.memory_space<vmem>>, vector<64x64xbf16>
    %cst_13 = arith.constant dense<0.000000e+00> : vector<8x64xf32>
    %14 = tpu.matmul %12, %13, %cst_13 {dimension_numbers = #tpu.dot_dimension_numbers<[1], [0], [0], [1], [0, 0, 1, 1], [], []>} : vector<8x64xbf16>, vector<64x64xbf16>, vector<8x64xf32> -> vector<8x64xf32>
    %c0_14 = arith.constant 0 : index
    %c0_15 = arith.constant 0 : index
    %15 = vector.load %arg7[%c0_14, %c0_15] : memref<1x64xf32, #tpu.memory_space<vmem>>, vector<1x64xf32>
    %16 = vector.broadcast %15 : vector<1x64xf32> to vector<8x64xf32>
    %17 = arith.addf %14, %16 : vector<8x64xf32>
    %cst_16 = arith.constant 0.000000e+00 : f32
    %18 = vector.broadcast %cst_16 : f32 to vector<8x64xf32>
    %19 = arith.maximumf %17, %18 : vector<8x64xf32>
    %20 = vector.extract_strided_slice %19 {offsets = [0, 0], sizes = [8, 32], strides = [1, 1]} : vector<8x64xf32> to vector<8x32xf32>
    %c0_17 = arith.constant 0 : index
    %c0_18 = arith.constant 0 : index
    %c0_19 = arith.constant 0 : index
    %21 = vector.load %arg8[%c0_17, %c0_18, %c0_19] : memref<2x1x32xf32, #tpu.memory_space<vmem>>, vector<1x1x32xf32>
    %22 = vector.shape_cast %21 : vector<1x1x32xf32> to vector<1x32xf32>
    %cst_20 = arith.constant dense<0.000000e+00> : vector<1x8xf32>
    %23 = tpu.matmul %22, %20, %cst_20 {dimension_numbers = #tpu.dot_dimension_numbers<[1], [1], [0], [0], [0, 0, 1, 0], [], []>} : vector<1x32xf32>, vector<8x32xf32>, vector<1x8xf32> -> vector<1x8xf32>
    %c0_21 = arith.constant 0 : index
    %24 = memref.load %arg9[%c0_21] : memref<2xf32, #tpu.memory_space<smem>>
    %25 = vector.broadcast %24 : f32 to vector<1x8xf32>
    %26 = arith.addf %23, %25 : vector<1x8xf32>
    %c0_22 = arith.constant 0 : index
    %c0_23 = arith.constant 0 : index
    %27 = vector.load %arg10[%c0_22, %c0_23] : memref<2x8xf32, #tpu.memory_space<vmem>>, vector<1x8xf32>
    tpu.vector_store %arg10[%c0_22, %c0_23], %26 {strides = array<i32>} : memref<2x8xf32, #tpu.memory_space<vmem>>, vector<1x8xf32>,
    %28 = vector.extract_strided_slice %19 {offsets = [0, 32], sizes = [8, 32], strides = [1, 1]} : vector<8x64xf32> to vector<8x32xf32>
    %c1 = arith.constant 1 : index
    %c0_24 = arith.constant 0 : index
    %c0_25 = arith.constant 0 : index
    %29 = vector.load %arg8[%c1, %c0_24, %c0_25] : memref<2x1x32xf32, #tpu.memory_space<vmem>>, vector<1x1x32xf32>
    %30 = vector.shape_cast %29 : vector<1x1x32xf32> to vector<1x32xf32>
    %cst_26 = arith.constant dense<0.000000e+00> : vector<1x8xf32>
    %31 = tpu.matmul %30, %28, %cst_26 {dimension_numbers = #tpu.dot_dimension_numbers<[1], [1], [0], [0], [0, 0, 1, 0], [], []>} : vector<1x32xf32>, vector<8x32xf32>, vector<1x8xf32> -> vector<1x8xf32>
    %c1_27 = arith.constant 1 : index
    %32 = memref.load %arg9[%c1_27] : memref<2xf32, #tpu.memory_space<smem>>
    %33 = vector.broadcast %32 : f32 to vector<1x8xf32>
    %34 = arith.addf %31, %33 : vector<1x8xf32>
    %c1_28 = arith.constant 1 : index
    %c0_29 = arith.constant 0 : index
    %35 = vector.load %arg10[%c1_28, %c0_29] : memref<2x8xf32, #tpu.memory_space<vmem>>, vector<1x8xf32>
    tpu.vector_store %arg10[%c1_28, %c0_29], %34 {strides = array<i32>} : memref<2x8xf32, #tpu.memory_space<vmem>>, vector<1x8xf32>,
    return
  }
  func.func @transform_0(%arg0: i32) -> (i32, i32) {
    %c0_i32 = arith.constant 0 : i32
    %c0_i32_0 = arith.constant 0 : i32
    return %arg0, %c0_i32 : i32, i32
  }
  func.func @transform_1(%arg0: i32) -> (i32, i32) {
    %c0_i32 = arith.constant 0 : i32
    %c0_i32_0 = arith.constant 0 : i32
    return %arg0, %c0_i32 : i32, i32
  }
  func.func @transform_2(%arg0: i32) -> (i32, i32) {
    %c0_i32 = arith.constant 0 : i32
    %c0_i32_0 = arith.constant 0 : i32
    %c0_i32_1 = arith.constant 0 : i32
    return %c0_i32, %c0_i32_0 : i32, i32
  }
  func.func @transform_3(%arg0: i32) -> (i32, i32) {
    %c0_i32 = arith.constant 0 : i32
    %c0_i32_0 = arith.constant 0 : i32
    %c0_i32_1 = arith.constant 0 : i32
    return %c0_i32, %c0_i32_0 : i32, i32
  }
  func.func @transform_4(%arg0: i32) -> (i32, i32) {
    %c0_i32 = arith.constant 0 : i32
    %c0_i32_0 = arith.constant 0 : i32
    %c0_i32_1 = arith.constant 0 : i32
    return %c0_i32, %c0_i32_0 : i32, i32
  }
  func.func @transform_5(%arg0: i32) -> (i32, i32) {
    %c0_i32 = arith.constant 0 : i32
    %c0_i32_0 = arith.constant 0 : i32
    %c0_i32_1 = arith.constant 0 : i32
    return %c0_i32, %c0_i32_0 : i32, i32
  }
  func.func @transform_6(%arg0: i32) -> (i32, i32) {
    %c0_i32 = arith.constant 0 : i32
    %c0_i32_0 = arith.constant 0 : i32
    %c0_i32_1 = arith.constant 0 : i32
    return %c0_i32, %c0_i32_0 : i32, i32
  }
  func.func @transform_7(%arg0: i32) -> (i32, i32, i32) {
    %c0_i32 = arith.constant 0 : i32
    %c0_i32_0 = arith.constant 0 : i32
    %c0_i32_1 = arith.constant 0 : i32
    %c0_i32_2 = arith.constant 0 : i32
    return %c0_i32, %c0_i32_0, %c0_i32_1 : i32, i32, i32
  }
  func.func @transform_8(%arg0: i32) -> i32 {
    %c0_i32 = arith.constant 0 : i32
    %c0_i32_0 = arith.constant 0 : i32
    return %c0_i32 : i32
  }
  func.func @transform_9(%arg0: i32) -> (i32, i32) {
    %c0_i32 = arith.constant 0 : i32
    %c0_i32_0 = arith.constant 0 : i32
    return %c0_i32, %arg0 : i32, i32
  }
}

</mosaic_0001>

<llo_original>
// kernel: tpu_custom_call.1
$region0: #{tpu_custom_call.1}
  #allocation0 [shape = 'u32[]', space=smem, size = 0x4, offset = 0x4, fixed_abs, tag = 'smem constant byte address 0x4 - core index']
  #allocation1 [shape = 'u32[72,128]{1,0:T(1,128)}', space=vmem, size = 0x9000, scoped, tag = 'internal scratch']
  %s0 = inlined_call_operand.hbm [shape: bf16[8,11], index: 0, kind: input, shape index: {}]
  %s1 = inlined_call_operand.hbm [shape: bf16[8,5], index: 1, kind: input, shape index: {}]
  %s2 = inlined_call_operand.hbm [shape: bf16[11,64], index: 2, kind: input, shape index: {}]
  %s3 = inlined_call_operand.hbm [shape: bf16[5,64], index: 3, kind: input, shape index: {}]
  %s4 = inlined_call_operand.vmem [shape: f32[1,64], index: 4, kind: input, shape index: {}]
  %s5 = inlined_call_operand.hbm [shape: bf16[64,64], index: 5, kind: input, shape index: {}]
  %s6 = inlined_call_operand.vmem [shape: f32[1,64], index: 6, kind: input, shape index: {}]
  %s7 = inlined_call_operand.vmem [shape: f32[2,1,32], index: 7, kind: input, shape index: {}]
  %s8 = inlined_call_operand.vmem [shape: f32[2], index: 8, kind: input, shape index: {}]
  %s9 = inlined_call_operand.hbm [shape: f32[2,8], index: 9, kind: output, shape index: {}]
  %s10 = sld [smem:[#allocation0]]
  $region70: #{tpu_custom_call.1} parent=0
    _
  %s12 = ssub.s32 1, %s10
  %s13 = scalar_select 0, %s12, %s10
  $region1: #{tpu_custom_call.1} parent=0
    #allocation2 [shape = 'u8[2048]{0}', space=vmem, size = 0x800, scoped, tag = 'input window, operand 0, single buffered']
    #allocation3 [shape = 's32[1]{0}', space=sflag, size = 0x4, scoped, tag = 'scoped memory for tpu_custom_call.1']
    #allocation4 [shape = 's32[1]{0}', space=sflag, size = 0x4, scoped, tag = 'scoped memory for tpu_custom_call.1']
    #allocation5 [shape = 's32[1]{0}', space=sflag, size = 0x4, scoped, tag = 'scoped memory for tpu_custom_call.1']
    #allocation6 [shape = 'u8[2048]{0}', space=vmem, size = 0x800, scoped, tag = 'input window, operand 1, single buffered']
    #allocation7 [shape = 's32[1]{0}', space=sflag, size = 0x4, scoped, tag = 'scoped memory for tpu_custom_call.1']
    #allocation8 [shape = 'u8[4096]{0}', space=vmem, size = 0x1000, scoped, tag = 'input window, operand 2, single buffered']
    #allocation9 [shape = 'u8[2048]{0}', space=vmem, size = 0x800, scoped, tag = 'input window, operand 3, single buffered']
    #allocation10 [shape = 's32[1]{0}', space=sflag, size = 0x4, scoped, tag = 'scoped memory for tpu_custom_call.1']
    #allocation11 [shape = 'u8[16384]{0}', space=vmem, size = 0x4000, scoped, tag = 'input window, operand 5, single buffered']
    #allocation12 [shape = 'u8[512]{0}', space=smem, size = 0x200, scoped, tag = 'input window, operand 8, single buffered']
    #allocation13 [shape = 'u8[1024]{0}', space=vmem, size = 0x400, scoped, tag = 'output window, operand 0, single buffered']
    %14 = vsyncpa [#allocation3], 0
    %15 = vsyncpa [#allocation7], 0
    %16 = vsyncpa [#allocation10], 0
    %17 = vsyncpa [#allocation5], 0
    %18 = vsyncpa [#allocation4], 0
    // Predicated region
    $region2: #{tpu_custom_call.1} parent=1 // pred_check
      _
    $region3: #{tpu_custom_call.1} parent=1 // pred_check_branch
      %20 = sbr.rel (0) target = $region5
    $region4: #{tpu_custom_call.1} parent=1 // pred_region
      %22 = vsyncadd [#allocation3], 0
      %s24 = sshll.u32 %s0, 4
      %s25 = int_to_ptr.hbm [resolvable:$true] %s24
      %s26 = sshll.u32 [#allocation2], 4
      %s27 = int_to_ptr.vmem [resolvable:$true] %s26
      %29 = dma.hbm_to_vmem [thread:$0]  %s25, 64, %s27, [#allocation3]
    $region5: #{tpu_custom_call.1} parent=1 // pred_fallthru
      _
    // Predicated region
    $region6: #{tpu_custom_call.1} parent=1 // pred_check
      _
    $region7: #{tpu_custom_call.1} parent=1 // pred_check_branch
      %31 = sbr.rel (0) target = $region9
    $region8: #{tpu_custom_call.1} parent=1 // pred_region
      %33 = vsyncadd [#allocation7], 0
      %s35 = sshll.u32 %s1, 4
      %s36 = int_to_ptr.hbm [resolvable:$true] %s35
      %s37 = sshll.u32 [#allocation6], 4
      %s38 = int_to_ptr.vmem [resolvable:$true] %s37
      %40 = dma.hbm_to_vmem [thread:$0]  %s36, 64, %s38, [#allocation7]
    $region9: #{tpu_custom_call.1} parent=1 // pred_fallthru
      _
    // Predicated region
    $region10: #{tpu_custom_call.1} parent=1 // pred_check
      _
    $region11: #{tpu_custom_call.1} parent=1 // pred_check_branch
      %42 = sbr.rel (0) target = $region13
    $region12: #{tpu_custom_call.1} parent=1 // pred_region
      %44 = vsyncadd [#allocation7], 0
      %s45 = sshll.u32 %s2, 4
      %s46 = int_to_ptr.hbm [resolvable:$true] %s45
      %s47 = sshll.u32 [#allocation8], 4
      %s48 = int_to_ptr.vmem [resolvable:$true] %s47
      %53 = dma.hbm_to_vmem [thread:$0]  %s46, 128, %s48, [#allocation7], 64, 64, 4
    $region13: #{tpu_custom_call.1} parent=1 // pred_fallthru
      _
    // Predicated region
    $region14: #{tpu_custom_call.1} parent=1 // pred_check
      _
    $region15: #{tpu_custom_call.1} parent=1 // pred_check_branch
      %55 = sbr.rel (0) target = $region17
    $region16: #{tpu_custom_call.1} parent=1 // pred_region
      %57 = vsyncadd [#allocation10], 0
      %s59 = sshll.u32 %s3, 4
      %s60 = int_to_ptr.hbm [resolvable:$true] %s59
      %s61 = sshll.u32 [#allocation9], 4
      %s62 = int_to_ptr.vmem [resolvable:$true] %s61
      %64 = dma.hbm_to_vmem [thread:$0]  %s60, 64, %s62, [#allocation10]
    $region17: #{tpu_custom_call.1} parent=1 // pred_fallthru
      _
    // Predicated region
    $region18: #{tpu_custom_call.1} parent=1 // pred_check
      _
    $region19: #{tpu_custom_call.1} parent=1 // pred_check_branch
      %66 = sbr.rel (0) target = $region21
    $region20: #{tpu_custom_call.1} parent=1 // pred_region
      _
    $region21: #{tpu_custom_call.1} parent=1 // pred_fallthru
      _
    // Predicated region
    $region22: #{tpu_custom_call.1} parent=1 // pred_check
      _
    $region23: #{tpu_custom_call.1} parent=1 // pred_check_branch
      %68 = sbr.rel (0) target = $region25
    $region24: #{tpu_custom_call.1} parent=1 // pred_region
      %70 = vsyncadd [#allocation10], 0
      %s71 = sshll.u32 %s5, 4
      %s72 = int_to_ptr.hbm [resolvable:$true] %s71
      %s73 = sshll.u32 [#allocation11], 4
      %s74 = int_to_ptr.vmem [resolvable:$true] %s73
      %79 = dma.hbm_to_vmem [thread:$0]  %s72, 512, %s74, [#allocation10], 64, 64, 4
    $region25: #{tpu_custom_call.1} parent=1 // pred_fallthru
      _
    // Predicated region
    $region26: #{tpu_custom_call.1} parent=1 // pred_check
      _
    $region27: #{tpu_custom_call.1} parent=1 // pred_check_branch
      %81 = sbr.rel (0) target = $region29
    $region28: #{tpu_custom_call.1} parent=1 // pred_region
      _
    $region29: #{tpu_custom_call.1} parent=1 // pred_fallthru
      _
    // Predicated region
    $region30: #{tpu_custom_call.1} parent=1 // pred_check
      _
    $region31: #{tpu_custom_call.1} parent=1 // pred_check_branch
      %83 = sbr.rel (0) target = $region33
    $region32: #{tpu_custom_call.1} parent=1 // pred_region
      _
    $region33: #{tpu_custom_call.1} parent=1 // pred_fallthru
      _
    // Predicated region
    $region34: #{tpu_custom_call.1} parent=1 // pred_check
      _
    $region35: #{tpu_custom_call.1} parent=1 // pred_check_branch
      %85 = sbr.rel (0) target = $region37
    $region36: #{tpu_custom_call.1} parent=1 // pred_region
      %87 = vsyncadd [#allocation5], 0
      %s89 = sshll.u32 %s8, 4
      %s90 = int_to_ptr.vmem [resolvable:$true] %s89
      %92 = dma.vmem_to_smem %s90, 16, [#allocation12], [#allocation5]
    $region37: #{tpu_custom_call.1} parent=1 // pred_fallthru
      _
    // Predicated region
    $region38: #{tpu_custom_call.1} parent=1 // pred_check
      _
    $region39: #{tpu_custom_call.1} parent=1 // pred_check_branch
      %94 = sbr.rel (0) target = $region41
    $region40: #{tpu_custom_call.1} parent=1 // pred_region
      %96 = dma.done [#allocation3], 64
    $region41: #{tpu_custom_call.1} parent=1 // pred_fallthru
      _
    // Predicated region
    $region42: #{tpu_custom_call.1} parent=1 // pred_check
      _
    $region43: #{tpu_custom_call.1} parent=1 // pred_check_branch
      %98 = sbr.rel (0) target = $region45
    $region44: #{tpu_custom_call.1} parent=1 // pred_region
      %100 = dma.done [#allocation7], 64
    $region45: #{tpu_custom_call.1} parent=1 // pred_fallthru
      _
    // Predicated region
    $region46: #{tpu_custom_call.1} parent=1 // pred_check
      _
    $region47: #{tpu_custom_call.1} parent=1 // pred_check_branch
      %102 = sbr.rel (0) target = $region49
    $region48: #{tpu_custom_call.1} parent=1 // pred_region
      %104 = dma.done [#allocation7], 128
    $region49: #{tpu_custom_call.1} parent=1 // pred_fallthru
      _
    // Predicated region
    $region50: #{tpu_custom_call.1} parent=1 // pred_check
      _
    $region51: #{tpu_custom_call.1} parent=1 // pred_check_branch
      %106 = sbr.rel (0) target = $region53
    $region52: #{tpu_custom_call.1} parent=1 // pred_region
      %108 = dma.done [#allocation10], 64
    $region53: #{tpu_custom_call.1} parent=1 // pred_fallthru
      _
    // Predicated region
    $region54: #{tpu_custom_call.1} parent=1 // pred_check
      _
    $region55: #{tpu_custom_call.1} parent=1 // pred_check_branch
      %110 = sbr.rel (0) target = $region57
    $region56: #{tpu_custom_call.1} parent=1 // pred_region
      %112 = dma.done [#allocation10], 512
    $region57: #{tpu_custom_call.1} parent=1 // pred_fallthru
      _
    // Predicated region
    $region58: #{tpu_custom_call.1} parent=1 // pred_check
      _
    $region59: #{tpu_custom_call.1} parent=1 // pred_check_branch
      %114 = sbr.rel (0) target = $region61
    $region60: #{tpu_custom_call.1} parent=1 // pred_region
      %116 = dma.done [#allocation5], 16
    $region61: #{tpu_custom_call.1} parent=1 // pred_fallthru
      _
    %117 = sfence
    %v119 = vld [vmem:[#allocation2] sm:$0xf]
    %v120 = vld [vmem:[#allocation6] sm:$0xf]
    %v121 = vld [vmem:[#allocation8] sm:$0xf]
    %v122 = vld [vmem:[#allocation8 + $0x4] sm:$0x3]
    %v123 = vld [vmem:[#allocation9] sm:$0x7]
    %vm124 = vcmask 39936
    %v126 = vsel %vm124, %v120, 0
    %vm128 = vcmask 1041408
    %vm129 = vcmask 1042432
    %v130 = vsel %vm128, 4294967295, 65535
    %v131 = vsel %vm129, %v130, 0
    %v133 = vand.u32 %v123, %v131
    %135 = vmatpush.bf16.msra.mxu0 0
    %136 = vmatpush.bf16.msra.mxu0 0
    %137 = vmatpush.bf16.msra.mxu0 0
    %138 = vmatpush.bf16.msra.mxu0 0
    %139 = vmatpush.bf16.msra.mxu0 0
    %140 = vmatpush.bf16.msra.mxu0 0
    %141 = vmatpush.bf16.msra.mxu0 0
    %142 = vmatpush.bf16.msra.mxu0 %v133
    %143 = vmatmul.bf16.gmra.mxu0 %v126
    %v144 = vpop.f32.mrf.mxu0
    %v145 = vadd.f32 0.0, %v144
    %v146 = vpop.f32.mrf.mxu0
    %147 = vdwg.mxu0
    %v150 = vunpack.c.l.b16 %v121
    %v151 = vunpack.c.l.b16 %v122
    %v152 = vpack.c.b16 %v151, %v150
    %vm153 = vcmask 89088
    %v155 = vsel %vm153, %v119, 0
    %vm157 = vcmask 1044480
    %vm158 = vcmask 1045504
    %v159 = vsel %vm157, 4294967295, 65535
    %v160 = vsel %vm158, %v159, 0
    %v162 = vand.u32 %v152, %v160
    %164 = vmatpush.bf16.msra.mxu0 0
    %165 = vmatpush.bf16.msra.mxu0 0
    %166 = vmatpush.bf16.msra.mxu0 0
    %167 = vmatpush.bf16.msra.mxu0 0
    %168 = vmatpush.bf16.msra.mxu0 0
    %169 = vmatpush.bf16.msra.mxu0 0
    %170 = vmatpush.bf16.msra.mxu0 0
    %171 = vmatpush.bf16.msra.mxu0 %v162
    %172 = vmatmul.bf16.gmra.mxu0 %v155
    %v173 = vpop.f32.mrf.mxu0
    %v174 = vadd.f32 %v145, %v173
    %v175 = vpop.f32.mrf.mxu0
    %176 = vdwg.mxu0
    %v177 = vld [vmem:[%s4] sm:$0x1]
    %v179 = vperm.slane %v177, 0
    %v181 = vadd.f32 %v174, %v179
    %v182 = vmax.f32 %v181, 0.0
    %v183 = vpack.c.bf16 %v182, %v182
    %v184 = vld [vmem:[#allocation11] sm:$0xf]
    %v185 = vld [vmem:[#allocation11 + $0x4] sm:$0xf]
    %v186 = vld [vmem:[#allocation11 + $0x8] sm:$0xf]
    %v187 = vld [vmem:[#allocation11 + $0xc] sm:$0xf]
    %v188 = vld [vmem:[#allocation11 + $0x10] sm:$0xf]
    %v189 = vld [vmem:[#allocation11 + $0x14] sm:$0xf]
    %v190 = vld [vmem:[#allocation11 + $0x18] sm:$0xf]
    %v191 = vld [vmem:[#allocation11 + $0x1c] sm:$0xf]
    %v192 = vld [vmem:[%s6] sm:$0x1]
    %v194 = vperm.slane %v192, 0
    %v204 = vunpack.c.l.b16 %v184
    %v205 = vunpack.c.l.b16 %v185
    %v206 = vunpack.c.l.b16 %v186
    %v207 = vunpack.c.l.b16 %v187
    %v208 = vunpack.c.l.b16 %v188
    %v209 = vunpack.c.l.b16 %v189
    %v210 = vunpack.c.l.b16 %v190
    %v211 = vunpack.c.l.b16 %v191
    %v212 = vpack.c.b16 %v205, %v204
    %v213 = vpack.c.b16 %v207, %v206
    %v214 = vpack.c.b16 %v209, %v208
    %v215 = vpack.c.b16 %v211, %v210
    %vm220 = vcmask 523264
    %v222 = vsel %vm220, %v183, 0
    %224 = vmatpush.bf16.msra.mxu0 0
    %225 = vmatpush.bf16.msra.mxu0 0
    %226 = vmatpush.bf16.msra.mxu0 0
    %227 = vmatpush.bf16.msra.mxu0 0
    %228 = vmatpush.bf16.msra.mxu0 %v215
    %229 = vmatpush.bf16.msra.mxu0 %v214
    %230 = vmatpush.bf16.msra.mxu0 %v213
    %231 = vmatpush.bf16.msra.mxu0 %v212
    %232 = vmatmul.bf16.gmra.mxu0 %v222
    %v233 = vpop.f32.mrf.mxu0
    %v234 = vadd.f32 %v194, %v233
    %v235 = vpop.f32.mrf.mxu0
    %236 = vdwg.mxu0
    %v237 = vmax.f32 %v234, 0.0
    %v238 = vld [vmem:[%s7] sm:$0x1]
    %s239 = sld [smem:[#allocation12]]
    %v240 = vstv %s239
    %vm241 = vcmask 261120
    %v243 = vsel %vm241, %v238, 0
    %v246 = vsel %vm241, %v237, 0
    %248 = vmatpush.xpose.msra.mxu0 0.0
    %249 = vmatpush.xpose.msra.mxu0 0.0
    %250 = vmatpush.xpose.msra.mxu0 0.0
    %251 = vmatpush.xpose.msra.mxu0 0.0
    %252 = vmatpush.xpose.msra.mxu0 0.0
    %253 = vmatpush.xpose.msra.mxu0 0.0
    %254 = vmatpush.xpose.msra.mxu0 0.0
    %255 = vmatpush.xpose.msra.mxu0 0.0
    %256 = vmatpush.xpose.msra.mxu0 0.0
    %257 = vmatpush.xpose.msra.mxu0 0.0
    %258 = vmatpush.xpose.msra.mxu0 0.0
    %259 = vmatpush.xpose.msra.mxu0 0.0
    %260 = vmatpush.xpose.msra.mxu0 0.0
    %261 = vmatpush.xpose.msra.mxu0 0.0
    %262 = vmatpush.xpose.msra.mxu0 0.0
    %263 = vmatpush.xpose.msra.mxu0 %v246
    %264 = vmatmul.f32.gmra.mxu0 %v243
    %v265 = vpop.f32.mrf.mxu0
    %v266 = vadd.f32 %v240, %v265
    %267 = vdwg.mxu0
    %vm268 = vcmask 57344
    %269 = vst.msk [vmem:[#allocation13] sm:$0x1] %vm268, %v266
    %s270 = scalar_lea.vmem %s7, 1
    %v271 = vld [vmem:[%s270] sm:$0x1]
    %s272 = sld [smem:[#allocation12 + $0x1]]
    %v273 = vstv %s272
    %274 = vrot.lane.b32.xlu0 %v237, 96
    %v275 = vpop.permute.xlu0 %274
    %v277 = vsel %vm241, %v271, 0
    %v279 = vsel %vm241, %v275, 0
    %281 = vmatpush.xpose.msra.mxu0 0.0
    %282 = vmatpush.xpose.msra.mxu0 0.0
    %283 = vmatpush.xpose.msra.mxu0 0.0
    %284 = vmatpush.xpose.msra.mxu0 0.0
    %285 = vmatpush.xpose.msra.mxu0 0.0
    %286 = vmatpush.xpose.msra.mxu0 0.0
    %287 = vmatpush.xpose.msra.mxu0 0.0
    %288 = vmatpush.xpose.msra.mxu0 0.0
    %289 = vmatpush.xpose.msra.mxu0 0.0
    %290 = vmatpush.xpose.msra.mxu0 0.0
    %291 = vmatpush.xpose.msra.mxu0 0.0
    %292 = vmatpush.xpose.msra.mxu0 0.0
    %293 = vmatpush.xpose.msra.mxu0 0.0
    %294 = vmatpush.xpose.msra.mxu0 0.0
    %295 = vmatpush.xpose.msra.mxu0 0.0
    %296 = vmatpush.xpose.msra.mxu0 %v279
    %297 = vmatmul.f32.gmra.mxu0 %v277
    %v298 = vpop.f32.mrf.mxu0
    %v299 = vadd.f32 %v273, %v298
    %300 = vdwg.mxu0
    %301 = vst.msk [vmem:[#allocation13 + $0x1] sm:$0x1] %vm268, %v299
    // Predicated region
    $region62: #{tpu_custom_call.1} parent=1 // pred_check
      _
    $region63: #{tpu_custom_call.1} parent=1 // pred_check_branch
      %303 = sbr.rel (0) target = $region65
    $region64: #{tpu_custom_call.1} parent=1 // pred_region
      %305 = vsyncadd [#allocation4], 0
      %s307 = sshll.u32 [#allocation13], 4
      %s308 = int_to_ptr.vmem [resolvable:$true] %s307
      %s309 = sshll.u32 %s9, 4
      %s310 = int_to_ptr.hbm [resolvable:$true] %s309
      %312 = dma.vmem_to_hbm [thread:$0]  %s308, 32, %s310, [#allocation4]
    $region65: #{tpu_custom_call.1} parent=1 // pred_fallthru
      _
    // Predicated region
    $region66: #{tpu_custom_call.1} parent=1 // pred_check
      _
    $region67: #{tpu_custom_call.1} parent=1 // pred_check_branch
      %314 = sbr.rel (0) target = $region69
    $region68: #{tpu_custom_call.1} parent=1 // pred_region
      %316 = dma.done [#allocation4], 32
    $region69: #{tpu_custom_call.1} parent=1 // pred_fallthru
      _
    %317 = vsyncpa [#allocation3], 1
    %318 = vsyncpa [#allocation7], 1
    %319 = vsyncpa [#allocation10], 1
    %320 = vsyncpa [#allocation4], 1
    %321 = vsyncpa [#allocation5], 1

</llo_original>
